<compile_context>
chip_gen: v7x
topology: tpu7x:2x2x1
jax: 0.10.0
libtpu: 0.0.40
codegen_flags: <defaults>
</compile_context>

<pallas_src>
import functools

import jax
import jax.numpy as jnp
from jax.experimental import pallas as pl
from jax.experimental.pallas import tpu as pltpu


STATE_SIZE = 4
HIDDEN_SIZE = 10
ACTION_SIZE = 2

_SUBLANE = 8      # f32 sublane multiple
_LANE = 128       # lane multiple
_BATCH_TILE = 256 # batch tile for the pipelined (large-batch) path


def _round_up(n, m):
    return ((n + m - 1) // m) * m


def _mlp_kernel(x_ref, w1_ref, b1_ref, w2_ref, b2_ref, out_ref):
    # x:  [TB, Sp]   w1: [Sp, Hp]   b1: [1, Hp]
    # w2: [Hp, Ap]   b2: [1, Ap]    out: [TB, Ap]   (all f32, lane-dense)
    h = jnp.dot(x_ref[...], w1_ref[...], preferred_element_type=jnp.float32)
    h = jnp.maximum(h + b1_ref[...], 0.0)          # bias + ReLU on the VPU
    y = jnp.dot(h, w2_ref[...], preferred_element_type=jnp.float32)
    out_ref[...] = y + b2_ref[...]


def pad_params(w1, b1, w2, b2):
    """Zero-pad parameters once to sublane/lane-dense shapes (numerically exact).

    Weights are stored as [in_features, out_features] (transpose of PyTorch's
    layout) so the kernel computes x @ W + b directly.
    """
    S, H = w1.shape
    A = w2.shape[1]
    Sp = _round_up(S, _SUBLANE)
    Hp = _round_up(H, _LANE)
    Ap = _round_up(A, _LANE)
    w1_p = jnp.zeros((Sp, Hp), jnp.float32).at[:S, :H].set(w1)
    b1_p = jnp.zeros((1, Hp), jnp.float32).at[0, :H].set(b1)
    w2_p = jnp.zeros((Hp, Ap), jnp.float32).at[:H, :A].set(w2)
    b2_p = jnp.zeros((1, Ap), jnp.float32).at[0, :A].set(b2)
    return w1_p, b1_p, w2_p, b2_p


@functools.partial(jax.jit, static_argnames=("action_size",))
def net_forward(x, w1_p, b1_p, w2_p, b2_p, action_size=ACTION_SIZE):
    """x: [B, state_size] f32, padded params -> [B, action_size] f32."""
    B, S = x.shape
    Sp, Hp = w1_p.shape
    Ap = w2_p.shape[1]

    if B <= _BATCH_TILE:
        # --- Small batch: no grid, no pipeline machinery. -------------------
        # All operands live whole in VMEM for a single kernel invocation.
        Bp = _round_up(B, _SUBLANE)
        x_p = jnp.zeros((Bp, Sp), jnp.float32).at[:B, :S].set(x)
        out_p = pl.pallas_call(
            _mlp_kernel,
            out_shape=jax.ShapeDtypeStruct((Bp, Ap), jnp.float32),
            in_specs=[pl.BlockSpec(memory_space=pltpu.MemorySpace.VMEM)] * 5,
            out_specs=pl.BlockSpec(memory_space=pltpu.MemorySpace.VMEM),
        )(x_p, w1_p, b1_p, w2_p, b2_p)
    else:
        # --- Large batch: tile the batch axis. -------------------------------
        # Weights/biases use index_map (0, 0) so they stay resident in VMEM
        # across grid steps; "parallel" lets the batch axis shard across both
        # TensorCores on v7x (no effect on v5e/v6e).
        TB = _BATCH_TILE
        Bp = _round_up(B, TB)
        x_p = jnp.zeros((Bp, Sp), jnp.float32).at[:B, :S].set(x)
        out_p = pl.pallas_call(
            _mlp_kernel,
            out_shape=jax.ShapeDtypeStruct((Bp, Ap), jnp.float32),
            grid=(Bp // TB,),
            in_specs=[
                pl.BlockSpec((TB, Sp), lambda i: (i, 0)),
                pl.BlockSpec((Sp, Hp), lambda i: (0, 0)),
                pl.BlockSpec((1, Hp), lambda i: (0, 0)),
                pl.BlockSpec((Hp, Ap), lambda i: (0, 0)),
                pl.BlockSpec((1, Ap), lambda i: (0, 0)),
            ],
            out_specs=pl.BlockSpec((TB, Ap), lambda i: (i, 0)),
            compiler_params=pltpu.CompilerParams(
                dimension_semantics=("parallel",)
            ),
        )(x_p, w1_p, b1_p, w2_p, b2_p)

    # Slice the lane-dense padded output back to the logical shape.
    return out_p[:B, :action_size]


def init_params(key, state_size=STATE_SIZE, hidden_size=HIDDEN_SIZE,
                action_size=ACTION_SIZE):
    """Deterministic init mimicking nn.Linear's U(-1/sqrt(fan_in), 1/sqrt(fan_in))."""
    k1, k2, k3, k4 = jax.random.split(key, 4)
    bound1 = 1.0 / jnp.sqrt(jnp.float32(state_size))
    bound2 = 1.0 / jnp.sqrt(jnp.float32(hidden_size))
    w1 = jax.random.uniform(k1, (state_size, hidden_size), jnp.float32,
                            -bound1, bound1)
    b1 = jax.random.uniform(k2, (hidden_size,), jnp.float32, -bound1, bound1)
    w2 = jax.random.uniform(k3, (hidden_size, action_size), jnp.float32,
                            -bound2, bound2)
    b2 = jax.random.uniform(k4, (action_size,), jnp.float32, -bound2, bound2)
    return w1, b1, w2, b2


def reference_forward(x, w1, b1, w2, b2):
    """Pure-JAX reference for correctness checking."""
    h = jnp.maximum(x @ w1 + b1, 0.0)
    return h @ w2 + b2


if __name__ == "__main__":
    key = jax.random.PRNGKey(0)
    kx_small, kx_big, kp = jax.random.split(key, 3)

    w1, b1, w2, b2 = init_params(kp)
    padded = pad_params(w1, b1, w2, b2)

    # Small batch -> no-grid single-invocation path.
    x_small = jax.random.normal(kx_small, (8, STATE_SIZE), dtype=jnp.float32)
    out_small = jax.block_until_ready(net_forward(x_small, *padded))
    ref_small = reference_forward(x_small, w1, b1, w2, b2)
    assert out_small.shape == (8, ACTION_SIZE)
    assert jnp.allclose(out_small, ref_small, atol=1e-5, rtol=1e-5), \
        "small-batch mismatch vs reference"

    # Larger batch -> batch-tiled "parallel" grid path.
    x_big = jax.random.normal(kx_big, (512, STATE_SIZE), dtype=jnp.float32)
    out_big = jax.block_until_ready(net_forward(x_big, *padded))
    ref_big = reference_forward(x_big, w1, b1, w2, b2)
    assert out_big.shape == (512, ACTION_SIZE)
    assert jnp.allclose(out_big, ref_big, atol=1e-5, rtol=1e-5), \
        "large-batch mismatch vs reference"

    print("KERNEL_OK")
</pallas_src>

<mosaic_0001>
module attributes {stable_mosaic.version = 11 : i64} {
  func.func @_mlp_kernel(%arg0: memref<8x8xf32, #tpu.memory_space<vmem>>, %arg1: memref<8x128xf32, #tpu.memory_space<vmem>>, %arg2: memref<1x128xf32, #tpu.memory_space<vmem>>, %arg3: memref<128x128xf32, #tpu.memory_space<vmem>>, %arg4: memref<1x128xf32, #tpu.memory_space<vmem>>, %arg5: memref<8x128xf32, #tpu.memory_space<vmem>>) attributes {dimension_semantics = [], scalar_prefetch = 0 : i64, scratch_operands = 0 : i64, tpu.core_type = #tpu.core_type<tc>} {
    %c0 = arith.constant 0 : index
    %c0_0 = arith.constant 0 : index
    %0 = vector.load %arg0[%c0, %c0_0] : memref<8x8xf32, #tpu.memory_space<vmem>>, vector<8x8xf32>
    %c0_1 = arith.constant 0 : index
    %c0_2 = arith.constant 0 : index
    %1 = vector.load %arg1[%c0_1, %c0_2] : memref<8x128xf32, #tpu.memory_space<vmem>>, vector<8x128xf32>
    %cst = arith.constant dense<0.000000e+00> : vector<8x128xf32>
    %2 = tpu.matmul %0, %1, %cst {dimension_numbers = #tpu.dot_dimension_numbers<[1], [0], [0], [1], [0, 0, 1, 1], [], []>} : vector<8x8xf32>, vector<8x128xf32>, vector<8x128xf32> -> vector<8x128xf32>
    %c0_3 = arith.constant 0 : index
    %c0_4 = arith.constant 0 : index
    %3 = vector.load %arg2[%c0_3, %c0_4] : memref<1x128xf32, #tpu.memory_space<vmem>>, vector<1x128xf32>
    %4 = vector.broadcast %3 : vector<1x128xf32> to vector<8x128xf32>
    %5 = arith.addf %2, %4 : vector<8x128xf32>
    %cst_5 = arith.constant 0.000000e+00 : f32
    %6 = vector.broadcast %cst_5 : f32 to vector<8x128xf32>
    %7 = arith.maximumf %5, %6 : vector<8x128xf32>
    %c0_6 = arith.constant 0 : index
    %c0_7 = arith.constant 0 : index
    %8 = vector.load %arg3[%c0_6, %c0_7] : memref<128x128xf32, #tpu.memory_space<vmem>>, vector<128x128xf32>
    %cst_8 = arith.constant dense<0.000000e+00> : vector<8x128xf32>
    %9 = tpu.matmul %7, %8, %cst_8 {dimension_numbers = #tpu.dot_dimension_numbers<[1], [0], [0], [1], [0, 0, 1, 1], [], []>} : vector<8x128xf32>, vector<128x128xf32>, vector<8x128xf32> -> vector<8x128xf32>
    %c0_9 = arith.constant 0 : index
    %c0_10 = arith.constant 0 : index
    %10 = vector.load %arg4[%c0_9, %c0_10] : memref<1x128xf32, #tpu.memory_space<vmem>>, vector<1x128xf32>
    %11 = vector.broadcast %10 : vector<1x128xf32> to vector<8x128xf32>
    %12 = arith.addf %9, %11 : vector<8x128xf32>
    %c0_11 = arith.constant 0 : index
    %c0_12 = arith.constant 0 : index
    %13 = vector.load %arg5[%c0_11, %c0_12] : memref<8x128xf32, #tpu.memory_space<vmem>>, vector<8x128xf32>
    tpu.vector_store %arg5[%c0_11, %c0_12], %12 {strides = array<i32>} : memref<8x128xf32, #tpu.memory_space<vmem>>, vector<8x128xf32>,
    return
  }
}

</mosaic_0001>

<llo_original>
// kernel: net_forward.1
$region0: #{net_forward.1}
  #allocation0 [shape = 'u32[]', space=smem, size = 0x4, offset = 0x4, fixed_abs, tag = 'smem constant byte address 0x4 - core index']
  #allocation1 [shape = 'u32[144,128]{1,0:T(1,128)}', space=vmem, size = 0x12000, scoped, tag = 'internal scratch']
  %s0 = inlined_call_operand.vmem [shape: f32[8,8], index: 0, kind: input, shape index: {}]
  %s1 = inlined_call_operand.vmem [shape: f32[8,128], index: 1, kind: input, shape index: {}]
  %s2 = inlined_call_operand.vmem [shape: f32[1,128], index: 2, kind: input, shape index: {}]
  %s3 = inlined_call_operand.hbm [shape: f32[128,128], index: 3, kind: input, shape index: {}]
  %s4 = inlined_call_operand.vmem [shape: f32[1,128], index: 4, kind: input, shape index: {}]
  %s5 = inlined_call_operand.vmem [shape: f32[8,128], index: 5, kind: output, shape index: {}]
  %s6 = sld [smem:[#allocation0]]
  $region34: #{net_forward.1} parent=0
    _
  %s8 = ssub.s32 1, %s6
  %s9 = scalar_select 0, %s8, %s6
  $region1: #{net_forward.1} parent=0
    #allocation2 [shape = 'u8[65536]{0}', space=vmem, size = 0x10000, scoped, tag = 'input window, operand 3, single buffered']
    #allocation3 [shape = 's32[1]{0}', space=sflag, size = 0x4, scoped, tag = 'scoped memory for net_forward.1']
    %10 = vsyncpa [#allocation3], 0
    // Predicated region
    $region2: #{net_forward.1} parent=1 // pred_check
      _
    $region3: #{net_forward.1} parent=1 // pred_check_branch
      %12 = sbr.rel (0) target = $region5
    $region4: #{net_forward.1} parent=1 // pred_region
      _
    $region5: #{net_forward.1} parent=1 // pred_fallthru
      _
    // Predicated region
    $region6: #{net_forward.1} parent=1 // pred_check
      _
    $region7: #{net_forward.1} parent=1 // pred_check_branch
      %14 = sbr.rel (0) target = $region9
    $region8: #{net_forward.1} parent=1 // pred_region
      _
    $region9: #{net_forward.1} parent=1 // pred_fallthru
      _
    // Predicated region
    $region10: #{net_forward.1} parent=1 // pred_check
      _
    $region11: #{net_forward.1} parent=1 // pred_check_branch
      %16 = sbr.rel (0) target = $region13
    $region12: #{net_forward.1} parent=1 // pred_region
      _
    $region13: #{net_forward.1} parent=1 // pred_fallthru
      _
    // Predicated region
    $region14: #{net_forward.1} parent=1 // pred_check
      _
    $region15: #{net_forward.1} parent=1 // pred_check_branch
      %18 = sbr.rel (0) target = $region17
    $region16: #{net_forward.1} parent=1 // pred_region
      %s20 = ssub.s32 2048, 2048
      %21 = vsyncadd [#allocation3], %s20
      %s22 = sshll.u32 [#allocation2], 4
      %s23 = int_to_ptr.vmem [resolvable:$true] %s22
      %28 = dma.hbm_to_vmem [thread:$0]  %s3, 2048, %s23, [#allocation3], 128, 128, 8
    $region17: #{net_forward.1} parent=1 // pred_fallthru
      _
    // Predicated region
    $region18: #{net_forward.1} parent=1 // pred_check
      _
    $region19: #{net_forward.1} parent=1 // pred_check_branch
      %30 = sbr.rel (0) target = $region21
    $region20: #{net_forward.1} parent=1 // pred_region
      _
    $region21: #{net_forward.1} parent=1 // pred_fallthru
      _
    // Predicated region
    $region22: #{net_forward.1} parent=1 // pred_check
      _
    $region23: #{net_forward.1} parent=1 // pred_check_branch
      %32 = sbr.rel (0) target = $region25
    $region24: #{net_forward.1} parent=1 // pred_region
      %33 = dma.done [#allocation3], 2048
    $region25: #{net_forward.1} parent=1 // pred_fallthru
      _
    %v34 = vld [vmem:[%s0] sm:$0xff]
    %v35 = vld [vmem:[%s1] sm:$0xff]
    %v36 = vld [vmem:[%s2] sm:$0x1]
    %v38 = vlaneseq
    %v39 = vshrl.u32 %v38, 7
    %v40 = vsub.s32 0, %v39
    %v41 = vrot.slane %v36, %v40
    %vm43 = vcmask 64512
    %v45 = vsel %vm43, %v34, 0
    %47 = vmatprep.subr.mxu0 0.0
    %48 = vmatpush1.msra.mxu0 %v35
    %49 = vmatprep.subr.mxu0 0.0
    %50 = vmatpush1.msra.mxu0 0.0
    %51 = vmatprep.subr.mxu0 0.0
    %52 = vmatpush1.msra.mxu0 0.0
    %53 = vmatprep.subr.mxu0 0.0
    %54 = vmatpush1.msra.mxu0 0.0
    %55 = vmatprep.subr.mxu0 0.0
    %56 = vmatpush1.msra.mxu0 0.0
    %57 = vmatprep.subr.mxu0 0.0
    %58 = vmatpush1.msra.mxu0 0.0
    %59 = vmatprep.subr.mxu0 0.0
    %60 = vmatpush1.msra.mxu0 0.0
    %61 = vmatprep.subr.mxu0 0.0
    %62 = vmatpush1.msra.mxu0 0.0
    %63 = vmatprep.subr.mxu0 0.0
    %64 = vmatpush1.msra.mxu0 0.0
    %65 = vmatprep.subr.mxu0 0.0
    %66 = vmatpush1.msra.mxu0 0.0
    %67 = vmatprep.subr.mxu0 0.0
    %68 = vmatpush1.msra.mxu0 0.0
    %69 = vmatprep.subr.mxu0 0.0
    %70 = vmatpush1.msra.mxu0 0.0
    %71 = vmatprep.subr.mxu0 0.0
    %72 = vmatpush1.msra.mxu0 0.0
    %73 = vmatprep.subr.mxu0 0.0
    %74 = vmatpush1.msra.mxu0 0.0
    %75 = vmatprep.subr.mxu0 0.0
    %76 = vmatpush1.msra.mxu0 0.0
    %77 = vmatprep.subr.mxu0 0.0
    %78 = vmatpush1.msra.mxu0 0.0
    %79 = vmatprep.subr.mxu0 0.0
    %80 = vmatpush1.msra.mxu0 0.0
    %81 = vmatprep.subr.mxu0 0.0
    %82 = vmatpush1.msra.mxu0 0.0
    %83 = vmatprep.subr.mxu0 0.0
    %84 = vmatpush1.msra.mxu0 0.0
    %85 = vmatprep.subr.mxu0 0.0
    %86 = vmatpush1.msra.mxu0 0.0
    %87 = vmatprep.subr.mxu0 0.0
    %88 = vmatpush1.msra.mxu0 0.0
    %89 = vmatprep.subr.mxu0 0.0
    %90 = vmatpush1.msra.mxu0 0.0
    %91 = vmatprep.subr.mxu0 0.0
    %92 = vmatpush1.msra.mxu0 0.0
    %93 = vmatprep.subr.mxu0 0.0
    %94 = vmatpush1.msra.mxu0 0.0
    %95 = vmatprep.subr.mxu0 0.0
    %96 = vmatpush1.msra.mxu0 0.0
    %97 = vmatprep.subr.mxu0 0.0
    %98 = vmatpush1.msra.mxu0 0.0
    %99 = vmatprep.subr.mxu0 0.0
    %100 = vmatpush1.msra.mxu0 0.0
    %101 = vmatprep.subr.mxu0 0.0
    %102 = vmatpush1.msra.mxu0 0.0
    %103 = vmatprep.subr.mxu0 0.0
    %104 = vmatpush1.msra.mxu0 0.0
    %105 = vmatprep.subr.mxu0 0.0
    %106 = vmatpush1.msra.mxu0 0.0
    %107 = vmatprep.subr.mxu0 0.0
    %108 = vmatpush1.msra.mxu0 0.0
    %109 = vmatprep.subr.mxu0 0.0
    %110 = vmatpush1.msra.mxu0 0.0
    %111 = vmatprep.mubr.f32.mxu0 0.0
    %112 = vmatmul.mubr.f32.gmra.mrb[0].mxu0 %v45
    %v113 = vpop.f32.mrb[0].mxu0
    %v114 = vadd.f32 %v41, %v113
    %v115 = vpop.f32.mrb[0].mxu0
    %116 = vdwg.mxu0
    %v117 = vmax.f32 %v114, 0.0
    %v118 = vld [vmem:[#allocation2] sm:$0xff]
    %v119 = vld [vmem:[#allocation2 + $0x8] sm:$0xff]
    %v120 = vld [vmem:[#allocation2 + $0x10] sm:$0xff]
    %v121 = vld [vmem:[#allocation2 + $0x18] sm:$0xff]
    %v122 = vld [vmem:[#allocation2 + $0x20] sm:$0xff]
    %v123 = vld [vmem:[#allocation2 + $0x28] sm:$0xff]
    %v124 = vld [vmem:[#allocation2 + $0x30] sm:$0xff]
    %v125 = vld [vmem:[#allocation2 + $0x38] sm:$0xff]
    %v126 = vld [vmem:[#allocation2 + $0x40] sm:$0xff]
    %v127 = vld [vmem:[#allocation2 + $0x48] sm:$0xff]
    %v128 = vld [vmem:[#allocation2 + $0x50] sm:$0xff]
    %v129 = vld [vmem:[#allocation2 + $0x58] sm:$0xff]
    %v130 = vld [vmem:[#allocation2 + $0x60] sm:$0xff]
    %v131 = vld [vmem:[#allocation2 + $0x68] sm:$0xff]
    %v132 = vld [vmem:[#allocation2 + $0x70] sm:$0xff]
    %v133 = vld [vmem:[#allocation2 + $0x78] sm:$0xff]
    %v134 = vld [vmem:[%s4] sm:$0x1]
    %v136 = vlaneseq
    %v137 = vshrl.u32 %v136, 7
    %v138 = vsub.s32 0, %v137
    %v139 = vrot.slane %v134, %v138
    %141 = vmatprep.subr.mxu0 0.0
    %142 = vmatpush1.msra.mxu0 %v118
    %143 = vmatprep.subr.mxu0 0.0
    %144 = vmatpush1.msra.mxu0 %v119
    %145 = vmatprep.subr.mxu0 0.0
    %146 = vmatpush1.msra.mxu0 %v120
    %147 = vmatprep.subr.mxu0 0.0
    %148 = vmatpush1.msra.mxu0 %v121
    %149 = vmatprep.subr.mxu0 0.0
    %150 = vmatpush1.msra.mxu0 %v122
    %151 = vmatprep.subr.mxu0 0.0
    %152 = vmatpush1.msra.mxu0 %v123
    %153 = vmatprep.subr.mxu0 0.0
    %154 = vmatpush1.msra.mxu0 %v124
    %155 = vmatprep.subr.mxu0 0.0
    %156 = vmatpush1.msra.mxu0 %v125
    %157 = vmatprep.subr.mxu0 0.0
    %158 = vmatpush1.msra.mxu0 %v126
    %159 = vmatprep.subr.mxu0 0.0
    %160 = vmatpush1.msra.mxu0 %v127
    %161 = vmatprep.subr.mxu0 0.0
    %162 = vmatpush1.msra.mxu0 %v128
    %163 = vmatprep.subr.mxu0 0.0
    %164 = vmatpush1.msra.mxu0 %v129
    %165 = vmatprep.subr.mxu0 0.0
    %166 = vmatpush1.msra.mxu0 %v130
    %167 = vmatprep.subr.mxu0 0.0
    %168 = vmatpush1.msra.mxu0 %v131
    %169 = vmatprep.subr.mxu0 0.0
    %170 = vmatpush1.msra.mxu0 %v132
    %171 = vmatprep.subr.mxu0 0.0
    %172 = vmatpush1.msra.mxu0 %v133
    %173 = vmatprep.subr.mxu0 0.0
    %174 = vmatpush1.msra.mxu0 0.0
    %175 = vmatprep.subr.mxu0 0.0
    %176 = vmatpush1.msra.mxu0 0.0
    %177 = vmatprep.subr.mxu0 0.0
    %178 = vmatpush1.msra.mxu0 0.0
    %179 = vmatprep.subr.mxu0 0.0
    %180 = vmatpush1.msra.mxu0 0.0
    %181 = vmatprep.subr.mxu0 0.0
    %182 = vmatpush1.msra.mxu0 0.0
    %183 = vmatprep.subr.mxu0 0.0
    %184 = vmatpush1.msra.mxu0 0.0
    %185 = vmatprep.subr.mxu0 0.0
    %186 = vmatpush1.msra.mxu0 0.0
    %187 = vmatprep.subr.mxu0 0.0
    %188 = vmatpush1.msra.mxu0 0.0
    %189 = vmatprep.subr.mxu0 0.0
    %190 = vmatpush1.msra.mxu0 0.0
    %191 = vmatprep.subr.mxu0 0.0
    %192 = vmatpush1.msra.mxu0 0.0
    %193 = vmatprep.subr.mxu0 0.0
    %194 = vmatpush1.msra.mxu0 0.0
    %195 = vmatprep.subr.mxu0 0.0
    %196 = vmatpush1.msra.mxu0 0.0
    %197 = vmatprep.subr.mxu0 0.0
    %198 = vmatpush1.msra.mxu0 0.0
    %199 = vmatprep.subr.mxu0 0.0
    %200 = vmatpush1.msra.mxu0 0.0
    %201 = vmatprep.subr.mxu0 0.0
    %202 = vmatpush1.msra.mxu0 0.0
    %203 = vmatprep.subr.mxu0 0.0
    %204 = vmatpush1.msra.mxu0 0.0
    %205 = vmatprep.mubr.f32.mxu0 0.0
    %206 = vmatmul.mubr.f32.gmra.mrb[0].mxu0 %v117
    %v207 = vpop.f32.mrb[0].mxu0
    %v208 = vadd.f32 %v139, %v207
    %v209 = vpop.f32.mrb[0].mxu0
    %210 = vdwg.mxu0
    %211 = vst [vmem:[%s5] sm:$0xff] %v208
    // Predicated region
    $region26: #{net_forward.1} parent=1 // pred_check
      _
    $region27: #{net_forward.1} parent=1 // pred_check_branch
      %213 = sbr.rel (0) target = $region29
    $region28: #{net_forward.1} parent=1 // pred_region
      _
    $region29: #{net_forward.1} parent=1 // pred_fallthru
      _
    // Predicated region
    $region30: #{net_forward.1} parent=1 // pred_check
      _
    $region31: #{net_forward.1} parent=1 // pred_check_branch
      %215 = sbr.rel (0) target = $region33
    $region32: #{net_forward.1} parent=1 // pred_region
      _
    $region33: #{net_forward.1} parent=1 // pred_fallthru
      _
    %216 = vsyncpa [#allocation3], 1

</llo_original>
